<compile_context>
chip_gen: v5e
topology: v5e:2x2
jax: 0.10.0
libtpu: 0.0.40
codegen_flags: <defaults>
</compile_context>

<pallas_src>
import jax
import jax.numpy as jnp
from jax.experimental import pallas as pl
from jax.experimental.pallas import tpu as pltpu

HIDDEN = 128
LANE = 128
SUBLANE = 8
# VMEM guard: 3 f32 (tile_b, 128) intermediates + double-buffered x/out tiles +
# ~0.5 MiB of weights stays < ~10 MiB at tile_b = 4096 -> safe on v5e/v6e/v7x.
MAX_TILE_B = 4096
TARGET_TILE_B = 2048   # amortize the ~0.35 us per-grid-step overhead


def _round_up(n, m):
    return ((n + m - 1) // m) * m


def _mlp_kernel(x_ref, w1_ref, b1_ref, w2_ref, b2_ref, w3_ref, b3_ref, o_ref):
    mm = w1_ref.dtype                       # matmul input dtype (f32 or bf16)
    # fc1 + ReLU (MXU matmul, f32 accumulate; bias/ReLU epilogue kept in f32 --
    # v5e has no bf16 VALU, and the f32 epilogue is free on v6e/v7x).
    x = x_ref[...].astype(mm)               # in-kernel cast (no-op for f32 path)
    h1 = jnp.dot(x, w1_ref[...], preferred_element_type=jnp.float32)
    h1 = jnp.maximum(h1 + b1_ref[...], 0.0)
    # fc2 + ReLU
    h2 = jnp.dot(h1.astype(mm), w2_ref[...], preferred_element_type=jnp.float32)
    h2 = jnp.maximum(h2 + b2_ref[...], 0.0)
    # fc3 (no activation).  w3 is lane-padded to a multiple of 128 for the MXU;
    # slice back to the true action_space before the store so only (tile_b, A)
    # floats go back to HBM (a few masked vst.msk lanes instead of a 128-wide
    # padded writeback + a separate XLA slice pass).
    out = jnp.dot(h2.astype(mm), w3_ref[...], preferred_element_type=jnp.float32)
    a = o_ref.shape[-1]
    o_ref[...] = (out[:, :a] + b3_ref[...]).astype(o_ref.dtype)


def prepare_params(params, *, use_bf16=False):
    """One-time parameter prep (do NOT call per forward step).

    Pads fc3 columns to a multiple of 128 (MXU-friendly) and optionally casts the
    weights to bf16 (f32 accumulate + f32 epilogue stay inside the kernel).
    Biases stay f32.  Returns a dict with an extra 'action_space' entry.
    """
    w1, b1 = params["w1"], params["b1"]
    w2, b2 = params["w2"], params["b2"]
    w3, b3 = params["w3"], params["b3"]
    A = w3.shape[1]
    A_pad = max(LANE, _round_up(A, LANE))
    if A_pad != A:
        w3 = jnp.pad(w3, ((0, 0), (0, A_pad - A)))     # zero cols: exact result
    mm_dtype = jnp.bfloat16 if use_bf16 else jnp.float32
    return {
        "w1": w1.astype(mm_dtype), "b1": b1.astype(jnp.float32),
        "w2": w2.astype(mm_dtype), "b2": b2.astype(jnp.float32),
        "w3": w3.astype(mm_dtype), "b3": b3.astype(jnp.float32),
        "action_space": A,
    }


def ann_qnet_forward(x, params, *, tile_b=None):
    """Fused forward pass of ANNQNet.

    x: (B, state_space) float32
    params: raw dict {w1 (S,128), b1 (1,128), w2, b2, w3 (128,A), b3 (1,A)} or the
            output of prepare_params() (preferred: avoids per-call padding/casts).
    returns: (B, action_space) float32
    """
    if "action_space" not in params:        # raw params -> prep on the fly
        params = prepare_params(params)
    A = params["action_space"]
    w1, b1 = params["w1"], params["b1"]
    w2, b2 = params["w2"], params["b2"]
    w3, b3 = params["w3"], params["b3"]

    B, S = x.shape
    A_pad = w3.shape[1]

    # --- Batch tiling: fit tiles to B, keep >=2 steps when possible (v7x). ---
    if tile_b is None:
        B8 = _round_up(max(B, SUBLANE), SUBLANE)
        n_steps = pl.cdiv(B8, TARGET_TILE_B)
        if n_steps == 1 and B8 >= 2 * SUBLANE:
            n_steps = 2                     # >=2 grid steps -> both v7x TCs busy
        tile_b = _round_up(pl.cdiv(B8, n_steps), SUBLANE)
    tile_b = max(SUBLANE, min(_round_up(tile_b, SUBLANE), MAX_TILE_B))
    B_pad = _round_up(max(B, SUBLANE), tile_b)
    if B_pad != B:
        x = jnp.pad(x, ((0, B_pad - B), (0, 0)))        # zero rows, sliced below

    grid = (B_pad // tile_b,)

    def const(arr):   # weights/biases: same block every step -> VMEM-resident
        nd = arr.ndim
        return pl.BlockSpec(arr.shape, lambda i: (0,) * nd)

    itemsize = lambda a: a.size * a.dtype.itemsize
    flops = 2 * B_pad * (S * HIDDEN + HIDDEN * HIDDEN + HIDDEN * A_pad)
    bytes_accessed = (itemsize(x) + itemsize(w1) + itemsize(b1)
                      + itemsize(w2) + itemsize(b2) + itemsize(w3) + itemsize(b3)
                      + B_pad * A * 4)

    out_pad = pl.pallas_call(
        _mlp_kernel,
        out_shape=jax.ShapeDtypeStruct((B_pad, A), jnp.float32),
        grid=grid,
        in_specs=[
            pl.BlockSpec((tile_b, S), lambda i: (i, 0)),       # x: batch-tiled
            const(w1), const(b1), const(w2), const(b2), const(w3), const(b3),
        ],
        # Unpadded output block: last dim == full array dim (legal), so no 128-
        # lane-padded HBM writeback and no follow-up slice pass.
        out_specs=pl.BlockSpec((tile_b, A), lambda i: (i, 0)),
        compiler_params=pltpu.CompilerParams(
            dimension_semantics=("parallel",)),                # megacore on v7x
        cost_estimate=pl.CostEstimate(flops=flops, transcendentals=0,
                                      bytes_accessed=bytes_accessed),
    )(x, w1, b1, w2, b2, w3, b3)

    return out_pad[:B] if B_pad != B else out_pad


def init_params(key, state_space, action_space):
    """Deterministic init mirroring nn.Linear's U(-1/sqrt(fan_in), 1/sqrt(fan_in))."""
    ks = jax.random.split(key, 6)

    def linear(kw, kb, fan_in, fan_out):
        bound = 1.0 / jnp.sqrt(fan_in)
        w = jax.random.uniform(kw, (fan_in, fan_out), jnp.float32, -bound, bound)
        b = jax.random.uniform(kb, (1, fan_out), jnp.float32, -bound, bound)
        return w, b

    w1, b1 = linear(ks[0], ks[1], state_space, HIDDEN)
    w2, b2 = linear(ks[2], ks[3], HIDDEN, HIDDEN)
    w3, b3 = linear(ks[4], ks[5], HIDDEN, action_space)
    return {"w1": w1, "b1": b1, "w2": w2, "b2": b2, "w3": w3, "b3": b3}


if __name__ == "__main__":
    key = jax.random.PRNGKey(0)
    state_space = 4      # e.g. CartPole observation dim
    action_space = 2
    batch = 2

    pkey, xkey, x2key = jax.random.split(key, 3)
    raw_params = init_params(pkey, state_space, action_space)
    params = prepare_params(raw_params)                 # one-time prep (f32 path)

    def ref_fwd(xs):
        h = jnp.maximum(xs @ raw_params["w1"] + raw_params["b1"], 0.0)
        h = jnp.maximum(h @ raw_params["w2"] + raw_params["b2"], 0.0)
        return h @ raw_params["w3"] + raw_params["b3"]

    # Small shape consistent with the module: B=2, S=4, A=2.
    x = jax.random.normal(xkey, (batch, state_space), jnp.float32)
    out = jax.block_until_ready(ann_qnet_forward(x, params))
    assert out.shape == (batch, action_space)
    assert jnp.allclose(out, ref_fwd(x), atol=1e-5, rtol=1e-5)

    # Batch-tiled grid path: non-multiple batch, explicit tile_b (grid of 3).
    xb = jax.random.normal(x2key, (300, state_space), jnp.float32)
    outb = jax.block_until_ready(ann_qnet_forward(xb, params, tile_b=128))
    assert outb.shape == (300, action_space)
    assert jnp.allclose(outb, ref_fwd(xb), atol=1e-4, rtol=1e-4)

    # Default (auto) tile sizing: splits into >=2 even tiles for v7x megacore.
    outb2 = jax.block_until_ready(ann_qnet_forward(xb, params))
    assert outb2.shape == (300, action_space)
    assert jnp.allclose(outb2, ref_fwd(xb), atol=1e-4, rtol=1e-4)

    # bf16 matmul-input path (f32 accumulate/epilogue): exercised for all chips.
    params_bf16 = prepare_params(raw_params, use_bf16=True)
    outc = jax.block_until_ready(ann_qnet_forward(xb, params_bf16))
    assert outc.shape == (300, action_space)
    assert bool(jnp.all(jnp.isfinite(outc)))

    print("KERNEL_OK")
</pallas_src>

<mosaic_0001>
module attributes {stable_mosaic.version = 11 : i64} {
  func.func @_mlp_kernel(%arg0: i32, %arg1: memref<8x4xf32, #tpu.memory_space<vmem>>, %arg2: memref<4x128xf32, #tpu.memory_space<vmem>>, %arg3: memref<1x128xf32, #tpu.memory_space<vmem>>, %arg4: memref<128x128xf32, #tpu.memory_space<vmem>>, %arg5: memref<1x128xf32, #tpu.memory_space<vmem>>, %arg6: memref<128x128xf32, #tpu.memory_space<vmem>>, %arg7: memref<1x2xf32, #tpu.memory_space<vmem>>, %arg8: memref<8x2xf32, #tpu.memory_space<vmem>>) attributes {dimension_semantics = [#tpu.dimension_semantics<parallel>], iteration_bounds = array<i64: 1>, scalar_prefetch = 0 : i64, scratch_operands = 0 : i64, tpu.core_type = #tpu.core_type<tc>, window_params = [{transform_indices = @transform_0, window_bounds = array<i64: 8, 4>}, {pipeline_mode = #tpu.pipeline_mode<synchronous>, transform_indices = @transform_1, window_bounds = array<i64: 4, 128>}, {pipeline_mode = #tpu.pipeline_mode<synchronous>, transform_indices = @transform_2, window_bounds = array<i64: 1, 128>}, {pipeline_mode = #tpu.pipeline_mode<synchronous>, transform_indices = @transform_3, window_bounds = array<i64: 128, 128>}, {pipeline_mode = #tpu.pipeline_mode<synchronous>, transform_indices = @transform_4, window_bounds = array<i64: 1, 128>}, {pipeline_mode = #tpu.pipeline_mode<synchronous>, transform_indices = @transform_5, window_bounds = array<i64: 128, 128>}, {pipeline_mode = #tpu.pipeline_mode<synchronous>, transform_indices = @transform_6, window_bounds = array<i64: 1, 2>}, {transform_indices = @transform_7, window_bounds = array<i64: 8, 2>}]} {
    %c0 = arith.constant 0 : index
    %c0_0 = arith.constant 0 : index
    %0 = vector.load %arg1[%c0, %c0_0] : memref<8x4xf32, #tpu.memory_space<vmem>>, vector<8x4xf32>
    %c0_1 = arith.constant 0 : index
    %c0_2 = arith.constant 0 : index
    %1 = vector.load %arg2[%c0_1, %c0_2] : memref<4x128xf32, #tpu.memory_space<vmem>>, vector<4x128xf32>
    %cst = arith.constant dense<0.000000e+00> : vector<8x128xf32>
    %2 = tpu.matmul %0, %1, %cst {dimension_numbers = #tpu.dot_dimension_numbers<[1], [0], [0], [1], [0, 0, 1, 1], [], []>} : vector<8x4xf32>, vector<4x128xf32>, vector<8x128xf32> -> vector<8x128xf32>
    %c0_3 = arith.constant 0 : index
    %c0_4 = arith.constant 0 : index
    %3 = vector.load %arg3[%c0_3, %c0_4] : memref<1x128xf32, #tpu.memory_space<vmem>>, vector<1x128xf32>
    %4 = vector.broadcast %3 : vector<1x128xf32> to vector<8x128xf32>
    %5 = arith.addf %2, %4 : vector<8x128xf32>
    %cst_5 = arith.constant 0.000000e+00 : f32
    %6 = vector.broadcast %cst_5 : f32 to vector<8x128xf32>
    %7 = arith.maximumf %5, %6 : vector<8x128xf32>
    %c0_6 = arith.constant 0 : index
    %c0_7 = arith.constant 0 : index
    %8 = vector.load %arg4[%c0_6, %c0_7] : memref<128x128xf32, #tpu.memory_space<vmem>>, vector<128x128xf32>
    %cst_8 = arith.constant dense<0.000000e+00> : vector<8x128xf32>
    %9 = tpu.matmul %7, %8, %cst_8 {dimension_numbers = #tpu.dot_dimension_numbers<[1], [0], [0], [1], [0, 0, 1, 1], [], []>} : vector<8x128xf32>, vector<128x128xf32>, vector<8x128xf32> -> vector<8x128xf32>
    %c0_9 = arith.constant 0 : index
    %c0_10 = arith.constant 0 : index
    %10 = vector.load %arg5[%c0_9, %c0_10] : memref<1x128xf32, #tpu.memory_space<vmem>>, vector<1x128xf32>
    %11 = vector.broadcast %10 : vector<1x128xf32> to vector<8x128xf32>
    %12 = arith.addf %9, %11 : vector<8x128xf32>
    %cst_11 = arith.constant 0.000000e+00 : f32
    %13 = vector.broadcast %cst_11 : f32 to vector<8x128xf32>
    %14 = arith.maximumf %12, %13 : vector<8x128xf32>
    %c0_12 = arith.constant 0 : index
    %c0_13 = arith.constant 0 : index
    %15 = vector.load %arg6[%c0_12, %c0_13] : memref<128x128xf32, #tpu.memory_space<vmem>>, vector<128x128xf32>
    %cst_14 = arith.constant dense<0.000000e+00> : vector<8x128xf32>
    %16 = tpu.matmul %14, %15, %cst_14 {dimension_numbers = #tpu.dot_dimension_numbers<[1], [0], [0], [1], [0, 0, 1, 1], [], []>} : vector<8x128xf32>, vector<128x128xf32>, vector<8x128xf32> -> vector<8x128xf32>
    %17 = vector.extract_strided_slice %16 {offsets = [0, 0], sizes = [8, 2], strides = [1, 1]} : vector<8x128xf32> to vector<8x2xf32>
    %c0_15 = arith.constant 0 : index
    %c0_16 = arith.constant 0 : index
    %18 = vector.load %arg7[%c0_15, %c0_16] : memref<1x2xf32, #tpu.memory_space<vmem>>, vector<1x2xf32>
    %19 = vector.broadcast %18 : vector<1x2xf32> to vector<8x2xf32>
    %20 = arith.addf %17, %19 : vector<8x2xf32>
    %c0_17 = arith.constant 0 : index
    %c0_18 = arith.constant 0 : index
    %21 = vector.load %arg8[%c0_17, %c0_18] : memref<8x2xf32, #tpu.memory_space<vmem>>, vector<8x2xf32>
    tpu.vector_store %arg8[%c0_17, %c0_18], %20 {strides = array<i32>} : memref<8x2xf32, #tpu.memory_space<vmem>>, vector<8x2xf32>,
    return
  }
  func.func @transform_0(%arg0: i32) -> (i32, i32) {
    %c0_i32 = arith.constant 0 : i32
    %c0_i32_0 = arith.constant 0 : i32
    return %arg0, %c0_i32 : i32, i32
  }
  func.func @transform_1(%arg0: i32) -> (i32, i32) {
    %c0_i32 = arith.constant 0 : i32
    %c0_i32_0 = arith.constant 0 : i32
    %c0_i32_1 = arith.constant 0 : i32
    return %c0_i32, %c0_i32_0 : i32, i32
  }
  func.func @transform_2(%arg0: i32) -> (i32, i32) {
    %c0_i32 = arith.constant 0 : i32
    %c0_i32_0 = arith.constant 0 : i32
    %c0_i32_1 = arith.constant 0 : i32
    return %c0_i32, %c0_i32_0 : i32, i32
  }
  func.func @transform_3(%arg0: i32) -> (i32, i32) {
    %c0_i32 = arith.constant 0 : i32
    %c0_i32_0 = arith.constant 0 : i32
    %c0_i32_1 = arith.constant 0 : i32
    return %c0_i32, %c0_i32_0 : i32, i32
  }
  func.func @transform_4(%arg0: i32) -> (i32, i32) {
    %c0_i32 = arith.constant 0 : i32
    %c0_i32_0 = arith.constant 0 : i32
    %c0_i32_1 = arith.constant 0 : i32
    return %c0_i32, %c0_i32_0 : i32, i32
  }
  func.func @transform_5(%arg0: i32) -> (i32, i32) {
    %c0_i32 = arith.constant 0 : i32
    %c0_i32_0 = arith.constant 0 : i32
    %c0_i32_1 = arith.constant 0 : i32
    return %c0_i32, %c0_i32_0 : i32, i32
  }
  func.func @transform_6(%arg0: i32) -> (i32, i32) {
    %c0_i32 = arith.constant 0 : i32
    %c0_i32_0 = arith.constant 0 : i32
    %c0_i32_1 = arith.constant 0 : i32
    return %c0_i32, %c0_i32_0 : i32, i32
  }
  func.func @transform_7(%arg0: i32) -> (i32, i32) {
    %c0_i32 = arith.constant 0 : i32
    %c0_i32_0 = arith.constant 0 : i32
    return %arg0, %c0_i32 : i32, i32
  }
}

</mosaic_0001>

<llo_original>
// kernel: tpu_custom_call.1
$region0: #{tpu_custom_call.1}
  #allocation0 [shape = 'u32[]', space=smem, size = 0x4, offset = 0x4, fixed_abs, tag = 'smem constant byte address 0x4 - core index']
  #allocation1 [shape = 'u32[72,128]{1,0:T(1,128)}', space=vmem, size = 0x9000, scoped, tag = 'internal scratch']
  %s0 = inlined_call_operand.vmem [shape: f32[8,4], index: 0, kind: input, shape index: {}]
  %s1 = inlined_call_operand.vmem [shape: f32[4,128], index: 1, kind: input, shape index: {}]
  %s2 = inlined_call_operand.vmem [shape: f32[1,128], index: 2, kind: input, shape index: {}]
  %s3 = inlined_call_operand.hbm [shape: f32[128,128], index: 3, kind: input, shape index: {}]
  %s4 = inlined_call_operand.vmem [shape: f32[1,128], index: 4, kind: input, shape index: {}]
  %s5 = inlined_call_operand.hbm [shape: f32[128,128], index: 5, kind: input, shape index: {}]
  %s6 = inlined_call_operand.vmem [shape: f32[1,2], index: 6, kind: input, shape index: {}]
  %s7 = inlined_call_operand.vmem [shape: f32[8,2], index: 7, kind: output, shape index: {}]
  %s8 = sld [smem:[#allocation0]]
  $region46: #{tpu_custom_call.1} parent=0
    _
  %s10 = ssub.s32 1, %s8
  %s11 = scalar_select 0, %s10, %s8
  $region1: #{tpu_custom_call.1} parent=0
    #allocation2 [shape = 'u8[65536]{0}', space=vmem, size = 0x10000, scoped, tag = 'input window, operand 3, single buffered']
    #allocation3 [shape = 's32[1]{0}', space=sflag, size = 0x4, scoped, tag = 'scoped memory for tpu_custom_call.1']
    #allocation4 [shape = 'u8[65536]{0}', space=vmem, size = 0x10000, scoped, tag = 'input window, operand 5, single buffered']
    #allocation5 [shape = 's32[1]{0}', space=sflag, size = 0x4, scoped, tag = 'scoped memory for tpu_custom_call.1']
    %12 = vsyncpa [#allocation3], 0
    %13 = vsyncpa [#allocation5], 0
    // Predicated region
    $region2: #{tpu_custom_call.1} parent=1 // pred_check
      _
    $region3: #{tpu_custom_call.1} parent=1 // pred_check_branch
      %15 = sbr.rel (0) target = $region5
    $region4: #{tpu_custom_call.1} parent=1 // pred_region
      _
    $region5: #{tpu_custom_call.1} parent=1 // pred_fallthru
      _
    // Predicated region
    $region6: #{tpu_custom_call.1} parent=1 // pred_check
      _
    $region7: #{tpu_custom_call.1} parent=1 // pred_check_branch
      %17 = sbr.rel (0) target = $region9
    $region8: #{tpu_custom_call.1} parent=1 // pred_region
      _
    $region9: #{tpu_custom_call.1} parent=1 // pred_fallthru
      _
    // Predicated region
    $region10: #{tpu_custom_call.1} parent=1 // pred_check
      _
    $region11: #{tpu_custom_call.1} parent=1 // pred_check_branch
      %19 = sbr.rel (0) target = $region13
    $region12: #{tpu_custom_call.1} parent=1 // pred_region
      _
    $region13: #{tpu_custom_call.1} parent=1 // pred_fallthru
      _
    // Predicated region
    $region14: #{tpu_custom_call.1} parent=1 // pred_check
      _
    $region15: #{tpu_custom_call.1} parent=1 // pred_check_branch
      %21 = sbr.rel (0) target = $region17
    $region16: #{tpu_custom_call.1} parent=1 // pred_region
      %23 = vsyncadd [#allocation3], 0
      %s24 = sshll.u32 %s3, 4
      %s25 = int_to_ptr.hbm [resolvable:$true] %s24
      %s26 = sshll.u32 [#allocation2], 4
      %s27 = int_to_ptr.vmem [resolvable:$true] %s26
      %32 = dma.hbm_to_vmem [thread:$0]  %s25, 2048, %s27, [#allocation3], 128, 128, 8
    $region17: #{tpu_custom_call.1} parent=1 // pred_fallthru
      _
    // Predicated region
    $region18: #{tpu_custom_call.1} parent=1 // pred_check
      _
    $region19: #{tpu_custom_call.1} parent=1 // pred_check_branch
      %34 = sbr.rel (0) target = $region21
    $region20: #{tpu_custom_call.1} parent=1 // pred_region
      _
    $region21: #{tpu_custom_call.1} parent=1 // pred_fallthru
      _
    // Predicated region
    $region22: #{tpu_custom_call.1} parent=1 // pred_check
      _
    $region23: #{tpu_custom_call.1} parent=1 // pred_check_branch
      %36 = sbr.rel (0) target = $region25
    $region24: #{tpu_custom_call.1} parent=1 // pred_region
      %38 = vsyncadd [#allocation5], 0
      %s39 = sshll.u32 %s5, 4
      %s40 = int_to_ptr.hbm [resolvable:$true] %s39
      %s41 = sshll.u32 [#allocation4], 4
      %s42 = int_to_ptr.vmem [resolvable:$true] %s41
      %47 = dma.hbm_to_vmem [thread:$0]  %s40, 2048, %s42, [#allocation5], 128, 128, 8
    $region25: #{tpu_custom_call.1} parent=1 // pred_fallthru
      _
    // Predicated region
    $region26: #{tpu_custom_call.1} parent=1 // pred_check
      _
    $region27: #{tpu_custom_call.1} parent=1 // pred_check_branch
      %49 = sbr.rel (0) target = $region29
    $region28: #{tpu_custom_call.1} parent=1 // pred_region
      _
    $region29: #{tpu_custom_call.1} parent=1 // pred_fallthru
      _
    // Predicated region
    $region30: #{tpu_custom_call.1} parent=1 // pred_check
      _
    $region31: #{tpu_custom_call.1} parent=1 // pred_check_branch
      %51 = sbr.rel (0) target = $region33
    $region32: #{tpu_custom_call.1} parent=1 // pred_region
      %53 = dma.done [#allocation3], 2048
    $region33: #{tpu_custom_call.1} parent=1 // pred_fallthru
      _
    // Predicated region
    $region34: #{tpu_custom_call.1} parent=1 // pred_check
      _
    $region35: #{tpu_custom_call.1} parent=1 // pred_check_branch
      %55 = sbr.rel (0) target = $region37
    $region36: #{tpu_custom_call.1} parent=1 // pred_region
      %57 = dma.done [#allocation5], 2048
    $region37: #{tpu_custom_call.1} parent=1 // pred_fallthru
      _
    %v58 = vld [vmem:[%s0] sm:$0xff]
    %v59 = vld [vmem:[%s1] sm:$0xf]
    %v60 = vld [vmem:[%s2] sm:$0x1]
    %v62 = vperm.slane %v60, 0
    %vm64 = vcmask 31744
    %v66 = vsel %vm64, %v58, 0
    %vm68 = vcmask 1043456
    %v70 = vsel %vm68, %v59, 0
    %72 = vmatpush.msra.mxu0 0.0
    %73 = vmatpush.msra.mxu0 0.0
    %74 = vmatpush.msra.mxu0 0.0
    %75 = vmatpush.msra.mxu0 0.0
    %76 = vmatpush.msra.mxu0 0.0
    %77 = vmatpush.msra.mxu0 0.0
    %78 = vmatpush.msra.mxu0 0.0
    %79 = vmatpush.msra.mxu0 0.0
    %80 = vmatpush.msra.mxu0 0.0
    %81 = vmatpush.msra.mxu0 0.0
    %82 = vmatpush.msra.mxu0 0.0
    %83 = vmatpush.msra.mxu0 0.0
    %84 = vmatpush.msra.mxu0 0.0
    %85 = vmatpush.msra.mxu0 0.0
    %86 = vmatpush.msra.mxu0 0.0
    %87 = vmatpush.msra.mxu0 %v70
    %88 = vmatmul.f32.gmra.mxu0 %v66
    %v89 = vpop.f32.mrf.mxu0
    %v90 = vadd.f32 %v62, %v89
    %91 = vdwg.mxu0
    %v92 = vmax.f32 %v90, 0.0
    %v93 = vld [vmem:[#allocation2] sm:$0xff]
    %v94 = vld [vmem:[#allocation2 + $0x8] sm:$0xff]
    %v95 = vld [vmem:[#allocation2 + $0x10] sm:$0xff]
    %v96 = vld [vmem:[#allocation2 + $0x18] sm:$0xff]
    %v97 = vld [vmem:[#allocation2 + $0x20] sm:$0xff]
    %v98 = vld [vmem:[#allocation2 + $0x28] sm:$0xff]
    %v99 = vld [vmem:[#allocation2 + $0x30] sm:$0xff]
    %v100 = vld [vmem:[#allocation2 + $0x38] sm:$0xff]
    %v101 = vld [vmem:[#allocation2 + $0x40] sm:$0xff]
    %v102 = vld [vmem:[#allocation2 + $0x48] sm:$0xff]
    %v103 = vld [vmem:[#allocation2 + $0x50] sm:$0xff]
    %v104 = vld [vmem:[#allocation2 + $0x58] sm:$0xff]
    %v105 = vld [vmem:[#allocation2 + $0x60] sm:$0xff]
    %v106 = vld [vmem:[#allocation2 + $0x68] sm:$0xff]
    %v107 = vld [vmem:[#allocation2 + $0x70] sm:$0xff]
    %v108 = vld [vmem:[#allocation2 + $0x78] sm:$0xff]
    %v109 = vld [vmem:[%s4] sm:$0x1]
    %v111 = vperm.slane %v109, 0
    %113 = vmatpush.msra.mxu0 %v108
    %114 = vmatpush.msra.mxu0 %v107
    %115 = vmatpush.msra.mxu0 %v106
    %116 = vmatpush.msra.mxu0 %v105
    %117 = vmatpush.msra.mxu0 %v104
    %118 = vmatpush.msra.mxu0 %v103
    %119 = vmatpush.msra.mxu0 %v102
    %120 = vmatpush.msra.mxu0 %v101
    %121 = vmatpush.msra.mxu0 %v100
    %122 = vmatpush.msra.mxu0 %v99
    %123 = vmatpush.msra.mxu0 %v98
    %124 = vmatpush.msra.mxu0 %v97
    %125 = vmatpush.msra.mxu0 %v96
    %126 = vmatpush.msra.mxu0 %v95
    %127 = vmatpush.msra.mxu0 %v94
    %128 = vmatpush.msra.mxu0 %v93
    %129 = vmatmul.f32.gmra.mxu0 %v92
    %v130 = vpop.f32.mrf.mxu0
    %v131 = vadd.f32 %v111, %v130
    %132 = vdwg.mxu0
    %v133 = vmax.f32 %v131, 0.0
    %v134 = vld [vmem:[#allocation4] sm:$0xff]
    %v135 = vld [vmem:[#allocation4 + $0x8] sm:$0xff]
    %v136 = vld [vmem:[#allocation4 + $0x10] sm:$0xff]
    %v137 = vld [vmem:[#allocation4 + $0x18] sm:$0xff]
    %v138 = vld [vmem:[#allocation4 + $0x20] sm:$0xff]
    %v139 = vld [vmem:[#allocation4 + $0x28] sm:$0xff]
    %v140 = vld [vmem:[#allocation4 + $0x30] sm:$0xff]
    %v141 = vld [vmem:[#allocation4 + $0x38] sm:$0xff]
    %v142 = vld [vmem:[#allocation4 + $0x40] sm:$0xff]
    %v143 = vld [vmem:[#allocation4 + $0x48] sm:$0xff]
    %v144 = vld [vmem:[#allocation4 + $0x50] sm:$0xff]
    %v145 = vld [vmem:[#allocation4 + $0x58] sm:$0xff]
    %v146 = vld [vmem:[#allocation4 + $0x60] sm:$0xff]
    %v147 = vld [vmem:[#allocation4 + $0x68] sm:$0xff]
    %v148 = vld [vmem:[#allocation4 + $0x70] sm:$0xff]
    %v149 = vld [vmem:[#allocation4 + $0x78] sm:$0xff]
    %150 = vmatpush.msra.mxu0 %v149
    %151 = vmatpush.msra.mxu0 %v148
    %152 = vmatpush.msra.mxu0 %v147
    %153 = vmatpush.msra.mxu0 %v146
    %154 = vmatpush.msra.mxu0 %v145
    %155 = vmatpush.msra.mxu0 %v144
    %156 = vmatpush.msra.mxu0 %v143
    %157 = vmatpush.msra.mxu0 %v142
    %158 = vmatpush.msra.mxu0 %v141
    %159 = vmatpush.msra.mxu0 %v140
    %160 = vmatpush.msra.mxu0 %v139
    %161 = vmatpush.msra.mxu0 %v138
    %162 = vmatpush.msra.mxu0 %v137
    %163 = vmatpush.msra.mxu0 %v136
    %164 = vmatpush.msra.mxu0 %v135
    %165 = vmatpush.msra.mxu0 %v134
    %166 = vmatmul.f32.gmra.mxu0 %v133
    %v167 = vpop.f32.mrf.mxu0
    %v168 = vadd.f32 0.0, %v167
    %169 = vdwg.mxu0
    %v170 = vld [vmem:[%s6] sm:$0x1]
    %v172 = vperm.slane %v170, 0
    %v174 = vadd.f32 %v168, %v172
    %vm175 = vcmask 15360
    %176 = vst.msk [vmem:[%s7] sm:$0xff] %vm175, %v174
    // Predicated region
    $region38: #{tpu_custom_call.1} parent=1 // pred_check
      _
    $region39: #{tpu_custom_call.1} parent=1 // pred_check_branch
      %178 = sbr.rel (0) target = $region41
    $region40: #{tpu_custom_call.1} parent=1 // pred_region
      _
    $region41: #{tpu_custom_call.1} parent=1 // pred_fallthru
      _
    // Predicated region
    $region42: #{tpu_custom_call.1} parent=1 // pred_check
      _
    $region43: #{tpu_custom_call.1} parent=1 // pred_check_branch
      %180 = sbr.rel (0) target = $region45
    $region44: #{tpu_custom_call.1} parent=1 // pred_region
      _
    $region45: #{tpu_custom_call.1} parent=1 // pred_fallthru
      _
    %181 = vsyncpa [#allocation3], 1
    %182 = vsyncpa [#allocation5], 1

</llo_original>
